<compile_context>
chip_gen: v7x
topology: tpu7x:2x2x1
jax: 0.10.0
libtpu: 0.0.40
codegen_flags: <defaults>
</compile_context>

<pallas_src>
import jax
import jax.numpy as jnp
from jax.experimental import pallas as pl
from jax.experimental.pallas import tpu as pltpu

_SUBLANE = 8
_CHUNK = 512            # rows per in-kernel sub-chunk (keeps intermediates small)
_TB_CAP = 16384         # v7x-safe tile cap (I/O tiles lane-pad to 128 in VMEM)


def _round_up(n, m):
    return ((n + m - 1) // m) * m


def _sigmoid1(x):
    # Single-transcendental sigmoid: 0.5 * (tanh(x/2) + 1) == 1/(1+exp(-x)).
    return 0.5 * (jnp.tanh(0.5 * x) + 1.0)


def _make_kernel(tb, chunk):
    """Kernel over one (tb, 19) batch tile, batch on sublanes."""

    def kernel(x_ref, w1_ref, b1_ref, w2_ref, b2_ref, w3_ref, b3_ref, o_ref):
        # Weights/biases are tiny and resident across the whole grid; load once.
        w1 = w1_ref[...]    # (19, H0)
        b1 = b1_ref[...]    # (1,  H0)
        w2 = w2_ref[...]    # (H0, H1)
        b2 = b2_ref[...]    # (1,  H1)
        w3 = w3_ref[...]    # (H1, 3)
        b3 = b3_ref[...]    # (1,  3)

        # Stream the tile through small sub-chunks so the (chunk, H) f32
        # intermediates never spill; slices are 8-sublane aligned and static.
        for start in range(0, tb, chunk):
            size = min(chunk, tb - start)
            x = x_ref[start:start + size, :]                                # (size, 19)
            h = jnp.dot(x, w1, preferred_element_type=jnp.float32) + b1
            h = _sigmoid1(h)                                                # (size, H0)
            h = jnp.dot(h, w2, preferred_element_type=jnp.float32) + b2
            h = _sigmoid1(h)                                                # (size, H1)
            out = jnp.dot(h, w3, preferred_element_type=jnp.float32) + b3
            o_ref[start:start + size, :] = out.astype(o_ref.dtype)          # (size, 3)

    return kernel


def _choose_batch_tile(b_pad, batch_tile):
    tb = min(_round_up(batch_tile, _SUBLANE), b_pad)
    tb = min(tb, _TB_CAP)
    # Prefer >= 8 grid steps (v7x: >= 4 per TensorCore) once each step still
    # gets >= ~1K rows of work, so megacore sharding / double-buffering help.
    even_split = _round_up(pl.cdiv(b_pad, 8), _SUBLANE)
    if even_split >= 1024:
        tb = min(tb, even_split)
    return tb


def _vmem_limit_bytes(tb):
    # x and out tiles are double-buffered and lane-padded to 128 lanes in VMEM;
    # add headroom for chunked intermediates, weights and compiler scratch.
    io_tiles = 4 * tb * 128 * 4
    return int(min(max(io_tiles + (8 << 20), 32 << 20), 48 << 20))


def simple_car_control_forward(x, params, *, batch_tile=8192):
    """x: (B, 19) f32.  params: torch-layout weights (out, in), biases (out, 1)."""
    B, n_in = x.shape
    w1, b1 = params["w1"], params["b1"]
    w2, b2 = params["w2"], params["b2"]
    w3, b3 = params["w3"], params["b3"]
    h0, h1, n_out = w1.shape[0], w2.shape[0], w3.shape[0]

    # Tiny one-time parameter relayout (a few KB) so the kernel can keep the
    # big activations in their natural (B, feature) layout.
    w1t, b1r = w1.T, b1.reshape(1, h0)
    w2t, b2r = w2.T, b2.reshape(1, h1)
    w3t, b3r = w3.T, b3.reshape(1, n_out)

    # Pad batch only to the 8-row sublane granule (usually a no-op).
    b_pad = _round_up(B, _SUBLANE)
    x_p = x if b_pad == B else jnp.pad(x, ((0, b_pad - B), (0, 0)))

    tb = _choose_batch_tile(b_pad, batch_tile)
    chunk = min(_CHUNK, tb)
    grid = (pl.cdiv(b_pad, tb),)          # partial last block handled by Pallas

    flops = 2 * b_pad * (n_in * h0 + h0 * h1 + h1 * n_out)
    transcendentals = b_pad * (h0 + h1)
    bytes_accessed = 4 * (b_pad * (n_in + n_out)
                          + sum(int(p.size) for p in params.values()))

    out = pl.pallas_call(
        _make_kernel(tb, chunk),
        out_shape=jax.ShapeDtypeStruct((b_pad, n_out), jnp.float32),
        grid=grid,
        in_specs=[
            # Activations: batch-tiled along sublanes, double-buffered by Pallas;
            # the block spans the full 19-wide last dim so the HBM DMA is contiguous.
            pl.BlockSpec((tb, n_in), lambda i: (i, 0)),
            # Weights / biases: constant index_map -> resident in VMEM across the grid.
            pl.BlockSpec((n_in, h0), lambda i: (0, 0)),
            pl.BlockSpec((1, h0), lambda i: (0, 0)),
            pl.BlockSpec((h0, h1), lambda i: (0, 0)),
            pl.BlockSpec((1, h1), lambda i: (0, 0)),
            pl.BlockSpec((h1, n_out), lambda i: (0, 0)),
            pl.BlockSpec((1, n_out), lambda i: (0, 0)),
        ],
        out_specs=pl.BlockSpec((tb, n_out), lambda i: (i, 0)),
        compiler_params=pltpu.CompilerParams(
            dimension_semantics=("parallel",),
            vmem_limit_bytes=_vmem_limit_bytes(tb)),
        cost_estimate=pl.CostEstimate(
            flops=flops,
            transcendentals=transcendentals,
            bytes_accessed=bytes_accessed),
    )(x_p, w1t, b1r, w2t, b2r, w3t, b3r)

    return out if b_pad == B else out[:B]


def init_params(key, network_sizes=(32, 32)):
    """Torch-style init (uniform +-1/sqrt(fan_in)); weights (out, in), biases (out, 1)."""
    h0, h1 = network_sizes
    dims = [(19, h0), (h0, h1), (h1, 3)]
    params = {}
    for idx, (fan_in, fan_out) in enumerate(dims, start=1):
        key, kw, kb = jax.random.split(key, 3)
        bound = 1.0 / jnp.sqrt(jnp.float32(fan_in))
        params[f"w{idx}"] = jax.random.uniform(
            kw, (fan_out, fan_in), jnp.float32, minval=-bound, maxval=bound)
        params[f"b{idx}"] = jax.random.uniform(
            kb, (fan_out, 1), jnp.float32, minval=-bound, maxval=bound)
    return params


def reference_forward(x, params):
    h = jax.nn.sigmoid(x @ params["w1"].T + params["b1"].T)
    h = jax.nn.sigmoid(h @ params["w2"].T + params["b2"].T)
    return h @ params["w3"].T + params["b3"].T


if __name__ == "__main__":
    key = jax.random.PRNGKey(0)
    kx, kx2, kp = jax.random.split(key, 3)

    network_sizes = (32, 32)
    params = init_params(kp, network_sizes)

    # Small sanity check (single block).
    B = 8
    x = jax.random.normal(kx, (B, 19), dtype=jnp.float32)
    out = jax.block_until_ready(simple_car_control_forward(x, params))
    ref = reference_forward(x, params)
    assert out.shape == (B, 3)
    assert jnp.allclose(out, ref, atol=5e-5, rtol=5e-5)

    # Multi-step grid with a partial final block (1000 rows, 256-row tiles).
    B2 = 1000
    x2 = jax.random.normal(kx2, (B2, 19), dtype=jnp.float32)
    out2 = jax.block_until_ready(
        simple_car_control_forward(x2, params, batch_tile=256))
    ref2 = reference_forward(x2, params)
    assert out2.shape == (B2, 3)
    assert jnp.allclose(out2, ref2, atol=5e-5, rtol=5e-5)

    print("KERNEL_OK")
</pallas_src>

<mosaic_0001>
module attributes {stable_mosaic.version = 11 : i64} {
  func.func @kernel(%arg0: i32, %arg1: memref<8x19xf32, #tpu.memory_space<vmem>>, %arg2: memref<19x32xf32, #tpu.memory_space<vmem>>, %arg3: memref<1x32xf32, #tpu.memory_space<vmem>>, %arg4: memref<32x32xf32, #tpu.memory_space<vmem>>, %arg5: memref<1x32xf32, #tpu.memory_space<vmem>>, %arg6: memref<32x3xf32, #tpu.memory_space<vmem>>, %arg7: memref<1x3xf32, #tpu.memory_space<vmem>>, %arg8: memref<8x3xf32, #tpu.memory_space<vmem>>) attributes {dimension_semantics = [#tpu.dimension_semantics<parallel>], iteration_bounds = array<i64: 1>, scalar_prefetch = 0 : i64, scratch_operands = 0 : i64, tpu.core_type = #tpu.core_type<tc>, window_params = [{transform_indices = @transform_0, window_bounds = array<i64: 8, 19>}, {pipeline_mode = #tpu.pipeline_mode<synchronous>, transform_indices = @transform_1, window_bounds = array<i64: 19, 32>}, {pipeline_mode = #tpu.pipeline_mode<synchronous>, transform_indices = @transform_2, window_bounds = array<i64: 1, 32>}, {pipeline_mode = #tpu.pipeline_mode<synchronous>, transform_indices = @transform_3, window_bounds = array<i64: 32, 32>}, {pipeline_mode = #tpu.pipeline_mode<synchronous>, transform_indices = @transform_4, window_bounds = array<i64: 1, 32>}, {pipeline_mode = #tpu.pipeline_mode<synchronous>, transform_indices = @transform_5, window_bounds = array<i64: 32, 3>}, {pipeline_mode = #tpu.pipeline_mode<synchronous>, transform_indices = @transform_6, window_bounds = array<i64: 1, 3>}, {transform_indices = @transform_7, window_bounds = array<i64: 8, 3>}]} {
    %c0 = arith.constant 0 : index
    %c0_0 = arith.constant 0 : index
    %0 = vector.load %arg2[%c0, %c0_0] : memref<19x32xf32, #tpu.memory_space<vmem>>, vector<19x32xf32>
    %c0_1 = arith.constant 0 : index
    %c0_2 = arith.constant 0 : index
    %1 = vector.load %arg3[%c0_1, %c0_2] : memref<1x32xf32, #tpu.memory_space<vmem>>, vector<1x32xf32>
    %c0_3 = arith.constant 0 : index
    %c0_4 = arith.constant 0 : index
    %2 = vector.load %arg4[%c0_3, %c0_4] : memref<32x32xf32, #tpu.memory_space<vmem>>, vector<32x32xf32>
    %c0_5 = arith.constant 0 : index
    %c0_6 = arith.constant 0 : index
    %3 = vector.load %arg5[%c0_5, %c0_6] : memref<1x32xf32, #tpu.memory_space<vmem>>, vector<1x32xf32>
    %c0_7 = arith.constant 0 : index
    %c0_8 = arith.constant 0 : index
    %4 = vector.load %arg6[%c0_7, %c0_8] : memref<32x3xf32, #tpu.memory_space<vmem>>, vector<32x3xf32>
    %c0_9 = arith.constant 0 : index
    %c0_10 = arith.constant 0 : index
    %5 = vector.load %arg7[%c0_9, %c0_10] : memref<1x3xf32, #tpu.memory_space<vmem>>, vector<1x3xf32>
    %c0_11 = arith.constant 0 : index
    %c0_12 = arith.constant 0 : index
    %6 = vector.load %arg1[%c0_11, %c0_12] : memref<8x19xf32, #tpu.memory_space<vmem>>, vector<8x19xf32>
    %cst = arith.constant dense<0.000000e+00> : vector<8x32xf32>
    %7 = tpu.matmul %6, %0, %cst {dimension_numbers = #tpu.dot_dimension_numbers<[1], [0], [0], [1], [0, 0, 1, 1], [], []>} : vector<8x19xf32>, vector<19x32xf32>, vector<8x32xf32> -> vector<8x32xf32>
    %8 = vector.broadcast %1 : vector<1x32xf32> to vector<8x32xf32>
    %9 = arith.addf %7, %8 : vector<8x32xf32>
    %cst_13 = arith.constant 5.000000e-01 : f32
    %10 = vector.broadcast %cst_13 : f32 to vector<8x32xf32>
    %11 = arith.mulf %10, %9 : vector<8x32xf32>
    %12 = math.tanh %11 : vector<8x32xf32>
    %cst_14 = arith.constant 1.000000e+00 : f32
    %13 = vector.broadcast %cst_14 : f32 to vector<8x32xf32>
    %14 = arith.addf %12, %13 : vector<8x32xf32>
    %cst_15 = arith.constant 5.000000e-01 : f32
    %15 = vector.broadcast %cst_15 : f32 to vector<8x32xf32>
    %16 = arith.mulf %15, %14 : vector<8x32xf32>
    %cst_16 = arith.constant dense<0.000000e+00> : vector<8x32xf32>
    %17 = tpu.matmul %16, %2, %cst_16 {dimension_numbers = #tpu.dot_dimension_numbers<[1], [0], [0], [1], [0, 0, 1, 1], [], []>} : vector<8x32xf32>, vector<32x32xf32>, vector<8x32xf32> -> vector<8x32xf32>
    %18 = vector.broadcast %3 : vector<1x32xf32> to vector<8x32xf32>
    %19 = arith.addf %17, %18 : vector<8x32xf32>
    %cst_17 = arith.constant 5.000000e-01 : f32
    %20 = vector.broadcast %cst_17 : f32 to vector<8x32xf32>
    %21 = arith.mulf %20, %19 : vector<8x32xf32>
    %22 = math.tanh %21 : vector<8x32xf32>
    %cst_18 = arith.constant 1.000000e+00 : f32
    %23 = vector.broadcast %cst_18 : f32 to vector<8x32xf32>
    %24 = arith.addf %22, %23 : vector<8x32xf32>
    %cst_19 = arith.constant 5.000000e-01 : f32
    %25 = vector.broadcast %cst_19 : f32 to vector<8x32xf32>
    %26 = arith.mulf %25, %24 : vector<8x32xf32>
    %cst_20 = arith.constant dense<0.000000e+00> : vector<8x3xf32>
    %27 = tpu.matmul %26, %4, %cst_20 {dimension_numbers = #tpu.dot_dimension_numbers<[1], [0], [0], [1], [0, 0, 1, 1], [], []>} : vector<8x32xf32>, vector<32x3xf32>, vector<8x3xf32> -> vector<8x3xf32>
    %28 = vector.broadcast %5 : vector<1x3xf32> to vector<8x3xf32>
    %29 = arith.addf %27, %28 : vector<8x3xf32>
    %c0_21 = arith.constant 0 : index
    %c0_22 = arith.constant 0 : index
    %30 = vector.load %arg8[%c0_21, %c0_22] : memref<8x3xf32, #tpu.memory_space<vmem>>, vector<8x3xf32>
    tpu.vector_store %arg8[%c0_21, %c0_22], %29 {strides = array<i32>} : memref<8x3xf32, #tpu.memory_space<vmem>>, vector<8x3xf32>,
    return
  }
  func.func @transform_0(%arg0: i32) -> (i32, i32) {
    %c0_i32 = arith.constant 0 : i32
    %c0_i32_0 = arith.constant 0 : i32
    return %arg0, %c0_i32 : i32, i32
  }
  func.func @transform_1(%arg0: i32) -> (i32, i32) {
    %c0_i32 = arith.constant 0 : i32
    %c0_i32_0 = arith.constant 0 : i32
    %c0_i32_1 = arith.constant 0 : i32
    return %c0_i32, %c0_i32_0 : i32, i32
  }
  func.func @transform_2(%arg0: i32) -> (i32, i32) {
    %c0_i32 = arith.constant 0 : i32
    %c0_i32_0 = arith.constant 0 : i32
    %c0_i32_1 = arith.constant 0 : i32
    return %c0_i32, %c0_i32_0 : i32, i32
  }
  func.func @transform_3(%arg0: i32) -> (i32, i32) {
    %c0_i32 = arith.constant 0 : i32
    %c0_i32_0 = arith.constant 0 : i32
    %c0_i32_1 = arith.constant 0 : i32
    return %c0_i32, %c0_i32_0 : i32, i32
  }
  func.func @transform_4(%arg0: i32) -> (i32, i32) {
    %c0_i32 = arith.constant 0 : i32
    %c0_i32_0 = arith.constant 0 : i32
    %c0_i32_1 = arith.constant 0 : i32
    return %c0_i32, %c0_i32_0 : i32, i32
  }
  func.func @transform_5(%arg0: i32) -> (i32, i32) {
    %c0_i32 = arith.constant 0 : i32
    %c0_i32_0 = arith.constant 0 : i32
    %c0_i32_1 = arith.constant 0 : i32
    return %c0_i32, %c0_i32_0 : i32, i32
  }
  func.func @transform_6(%arg0: i32) -> (i32, i32) {
    %c0_i32 = arith.constant 0 : i32
    %c0_i32_0 = arith.constant 0 : i32
    %c0_i32_1 = arith.constant 0 : i32
    return %c0_i32, %c0_i32_0 : i32, i32
  }
  func.func @transform_7(%arg0: i32) -> (i32, i32) {
    %c0_i32 = arith.constant 0 : i32
    %c0_i32_0 = arith.constant 0 : i32
    return %arg0, %c0_i32 : i32, i32
  }
}

</mosaic_0001>

<llo_original>
// kernel: tpu_custom_call.1
$region0: #{tpu_custom_call.1}
  #allocation0 [shape = 'u32[]', space=smem, size = 0x4, offset = 0x4, fixed_abs, tag = 'smem constant byte address 0x4 - core index']
  #allocation1 [shape = 'u32[144,128]{1,0:T(1,128)}', space=vmem, size = 0x12000, scoped, tag = 'internal scratch']
  %s0 = inlined_call_operand.vmem [shape: f32[8,19], index: 0, kind: input, shape index: {}]
  %s1 = inlined_call_operand.hbm [shape: f32[19,32], index: 1, kind: input, shape index: {}]
  %s2 = inlined_call_operand.vmem [shape: f32[1,32], index: 2, kind: input, shape index: {}]
  %s3 = inlined_call_operand.vmem [shape: f32[32,32], index: 3, kind: input, shape index: {}]
  %s4 = inlined_call_operand.vmem [shape: f32[1,32], index: 4, kind: input, shape index: {}]
  %s5 = inlined_call_operand.vmem [shape: f32[32,3], index: 5, kind: input, shape index: {}]
  %s6 = inlined_call_operand.vmem [shape: f32[1,3], index: 6, kind: input, shape index: {}]
  %s7 = inlined_call_operand.vmem [shape: f32[8,3], index: 7, kind: output, shape index: {}]
  %s8 = sld [smem:[#allocation0]]
  $region42: #{tpu_custom_call.1} parent=0
    _
  %s10 = ssub.s32 1, %s8
  %s11 = scalar_select 0, %s10, %s8
  $region1: #{tpu_custom_call.1} parent=0
    #allocation2 [shape = 'u8[12288]{0}', space=vmem, size = 0x3000, scoped, tag = 'input window, operand 1, single buffered']
    #allocation3 [shape = 's32[1]{0}', space=sflag, size = 0x4, scoped, tag = 'scoped memory for tpu_custom_call.1']
    %12 = vsyncpa [#allocation3], 0
    // Predicated region
    $region2: #{tpu_custom_call.1} parent=1 // pred_check
      _
    $region3: #{tpu_custom_call.1} parent=1 // pred_check_branch
      %14 = sbr.rel (0) target = $region5
    $region4: #{tpu_custom_call.1} parent=1 // pred_region
      _
    $region5: #{tpu_custom_call.1} parent=1 // pred_fallthru
      _
    // Predicated region
    $region6: #{tpu_custom_call.1} parent=1 // pred_check
      _
    $region7: #{tpu_custom_call.1} parent=1 // pred_check_branch
      %16 = sbr.rel (0) target = $region9
    $region8: #{tpu_custom_call.1} parent=1 // pred_region
      %s18 = ssub.s32 384, 384
      %19 = vsyncadd [#allocation3], %s18
      %s20 = sshll.u32 [#allocation2], 4
      %s21 = int_to_ptr.vmem [resolvable:$true] %s20
      %26 = dma.hbm_to_vmem [thread:$0]  %s1, 384, %s21, [#allocation3], 128, 128, 8
    $region9: #{tpu_custom_call.1} parent=1 // pred_fallthru
      _
    // Predicated region
    $region10: #{tpu_custom_call.1} parent=1 // pred_check
      _
    $region11: #{tpu_custom_call.1} parent=1 // pred_check_branch
      %28 = sbr.rel (0) target = $region13
    $region12: #{tpu_custom_call.1} parent=1 // pred_region
      _
    $region13: #{tpu_custom_call.1} parent=1 // pred_fallthru
      _
    // Predicated region
    $region14: #{tpu_custom_call.1} parent=1 // pred_check
      _
    $region15: #{tpu_custom_call.1} parent=1 // pred_check_branch
      %30 = sbr.rel (0) target = $region17
    $region16: #{tpu_custom_call.1} parent=1 // pred_region
      _
    $region17: #{tpu_custom_call.1} parent=1 // pred_fallthru
      _
    // Predicated region
    $region18: #{tpu_custom_call.1} parent=1 // pred_check
      _
    $region19: #{tpu_custom_call.1} parent=1 // pred_check_branch
      %32 = sbr.rel (0) target = $region21
    $region20: #{tpu_custom_call.1} parent=1 // pred_region
      _
    $region21: #{tpu_custom_call.1} parent=1 // pred_fallthru
      _
    // Predicated region
    $region22: #{tpu_custom_call.1} parent=1 // pred_check
      _
    $region23: #{tpu_custom_call.1} parent=1 // pred_check_branch
      %34 = sbr.rel (0) target = $region25
    $region24: #{tpu_custom_call.1} parent=1 // pred_region
      _
    $region25: #{tpu_custom_call.1} parent=1 // pred_fallthru
      _
    // Predicated region
    $region26: #{tpu_custom_call.1} parent=1 // pred_check
      _
    $region27: #{tpu_custom_call.1} parent=1 // pred_check_branch
      %36 = sbr.rel (0) target = $region29
    $region28: #{tpu_custom_call.1} parent=1 // pred_region
      _
    $region29: #{tpu_custom_call.1} parent=1 // pred_fallthru
      _
    // Predicated region
    $region30: #{tpu_custom_call.1} parent=1 // pred_check
      _
    $region31: #{tpu_custom_call.1} parent=1 // pred_check_branch
      %38 = sbr.rel (0) target = $region33
    $region32: #{tpu_custom_call.1} parent=1 // pred_region
      %39 = dma.done [#allocation3], 384
    $region33: #{tpu_custom_call.1} parent=1 // pred_fallthru
      _
    %v40 = vld [vmem:[#allocation2] sm:$0xff]
    %v41 = vld [vmem:[#allocation2 + $0x8] sm:$0xff]
    %v42 = vld [vmem:[#allocation2 + $0x10] sm:$0x7]
    %v43 = vld [vmem:[%s2] sm:$0x1]
    %v44 = vld [vmem:[%s3] sm:$0xff]
    %v45 = vld [vmem:[%s3 + $0x8] sm:$0xff]
    %v46 = vld [vmem:[%s3 + $0x10] sm:$0xff]
    %v47 = vld [vmem:[%s3 + $0x18] sm:$0xff]
    %v48 = vld [vmem:[%s4] sm:$0x1]
    %v49 = vld [vmem:[%s5] sm:$0xff]
    %v50 = vld [vmem:[%s5 + $0x8] sm:$0xff]
    %v51 = vld [vmem:[%s5 + $0x10] sm:$0xff]
    %v52 = vld [vmem:[%s5 + $0x18] sm:$0xff]
    %v53 = vld [vmem:[%s6] sm:$0x1]
    %v54 = vld [vmem:[%s0] sm:$0xff]
    %v56 = vlaneseq
    %v57 = vshrl.u32 %v56, 7
    %v58 = vsub.s32 0, %v57
    %v59 = vrot.slane %v43, %v58
    %vm61 = vcmask 154624
    %v63 = vsel %vm61, %v54, 0
    %vm65 = vcmask 1042432
    %v67 = vsel %vm65, %v42, 0
    %69 = vmatprep.subr.mxu0 0.0
    %70 = vmatpush1.msra.mxu0 %v40
    %71 = vmatprep.subr.mxu0 0.0
    %72 = vmatpush1.msra.mxu0 %v41
    %73 = vmatprep.subr.mxu0 0.0
    %74 = vmatpush1.msra.mxu0 %v67
    %75 = vmatprep.subr.mxu0 0.0
    %76 = vmatpush1.msra.mxu0 0.0
    %77 = vmatprep.subr.mxu0 0.0
    %78 = vmatpush1.msra.mxu0 0.0
    %79 = vmatprep.subr.mxu0 0.0
    %80 = vmatpush1.msra.mxu0 0.0
    %81 = vmatprep.subr.mxu0 0.0
    %82 = vmatpush1.msra.mxu0 0.0
    %83 = vmatprep.subr.mxu0 0.0
    %84 = vmatpush1.msra.mxu0 0.0
    %85 = vmatprep.subr.mxu0 0.0
    %86 = vmatpush1.msra.mxu0 0.0
    %87 = vmatprep.subr.mxu0 0.0
    %88 = vmatpush1.msra.mxu0 0.0
    %89 = vmatprep.subr.mxu0 0.0
    %90 = vmatpush1.msra.mxu0 0.0
    %91 = vmatprep.subr.mxu0 0.0
    %92 = vmatpush1.msra.mxu0 0.0
    %93 = vmatprep.subr.mxu0 0.0
    %94 = vmatpush1.msra.mxu0 0.0
    %95 = vmatprep.subr.mxu0 0.0
    %96 = vmatpush1.msra.mxu0 0.0
    %97 = vmatprep.subr.mxu0 0.0
    %98 = vmatpush1.msra.mxu0 0.0
    %99 = vmatprep.subr.mxu0 0.0
    %100 = vmatpush1.msra.mxu0 0.0
    %101 = vmatprep.subr.mxu0 0.0
    %102 = vmatpush1.msra.mxu0 0.0
    %103 = vmatprep.subr.mxu0 0.0
    %104 = vmatpush1.msra.mxu0 0.0
    %105 = vmatprep.subr.mxu0 0.0
    %106 = vmatpush1.msra.mxu0 0.0
    %107 = vmatprep.subr.mxu0 0.0
    %108 = vmatpush1.msra.mxu0 0.0
    %109 = vmatprep.subr.mxu0 0.0
    %110 = vmatpush1.msra.mxu0 0.0
    %111 = vmatprep.subr.mxu0 0.0
    %112 = vmatpush1.msra.mxu0 0.0
    %113 = vmatprep.subr.mxu0 0.0
    %114 = vmatpush1.msra.mxu0 0.0
    %115 = vmatprep.subr.mxu0 0.0
    %116 = vmatpush1.msra.mxu0 0.0
    %117 = vmatprep.subr.mxu0 0.0
    %118 = vmatpush1.msra.mxu0 0.0
    %119 = vmatprep.subr.mxu0 0.0
    %120 = vmatpush1.msra.mxu0 0.0
    %121 = vmatprep.subr.mxu0 0.0
    %122 = vmatpush1.msra.mxu0 0.0
    %123 = vmatprep.subr.mxu0 0.0
    %124 = vmatpush1.msra.mxu0 0.0
    %125 = vmatprep.subr.mxu0 0.0
    %126 = vmatpush1.msra.mxu0 0.0
    %127 = vmatprep.subr.mxu0 0.0
    %128 = vmatpush1.msra.mxu0 0.0
    %129 = vmatprep.subr.mxu0 0.0
    %130 = vmatpush1.msra.mxu0 0.0
    %131 = vmatprep.subr.mxu0 0.0
    %132 = vmatpush1.msra.mxu0 0.0
    %133 = vmatprep.mubr.f32.mxu0 0.0
    %134 = vmatmul.mubr.f32.gmra.mrb[0].mxu0 %v63
    %v135 = vpop.f32.mrb[0].mxu0
    %v136 = vadd.f32 %v59, %v135
    %v137 = vpop.f32.mrb[0].mxu0
    %138 = vdwg.mxu0
    %v139 = vmul.f32 %v136, 0.5
    %v140 = vtanh.pop %v139
    %v141 = vadd.f32 %v140, 1.0
    %v142 = vmul.f32 %v141, 0.5
    %v144 = vlaneseq
    %v145 = vshrl.u32 %v144, 7
    %v146 = vsub.s32 0, %v145
    %v147 = vrot.slane %v48, %v146
    %vm149 = vcmask 261120
    %v151 = vsel %vm149, %v142, 0
    %153 = vmatprep.subr.mxu0 0.0
    %154 = vmatpush1.msra.mxu0 %v44
    %155 = vmatprep.subr.mxu0 0.0
    %156 = vmatpush1.msra.mxu0 %v45
    %157 = vmatprep.subr.mxu0 0.0
    %158 = vmatpush1.msra.mxu0 %v46
    %159 = vmatprep.subr.mxu0 0.0
    %160 = vmatpush1.msra.mxu0 %v47
    %161 = vmatprep.subr.mxu0 0.0
    %162 = vmatpush1.msra.mxu0 0.0
    %163 = vmatprep.subr.mxu0 0.0
    %164 = vmatpush1.msra.mxu0 0.0
    %165 = vmatprep.subr.mxu0 0.0
    %166 = vmatpush1.msra.mxu0 0.0
    %167 = vmatprep.subr.mxu0 0.0
    %168 = vmatpush1.msra.mxu0 0.0
    %169 = vmatprep.subr.mxu0 0.0
    %170 = vmatpush1.msra.mxu0 0.0
    %171 = vmatprep.subr.mxu0 0.0
    %172 = vmatpush1.msra.mxu0 0.0
    %173 = vmatprep.subr.mxu0 0.0
    %174 = vmatpush1.msra.mxu0 0.0
    %175 = vmatprep.subr.mxu0 0.0
    %176 = vmatpush1.msra.mxu0 0.0
    %177 = vmatprep.subr.mxu0 0.0
    %178 = vmatpush1.msra.mxu0 0.0
    %179 = vmatprep.subr.mxu0 0.0
    %180 = vmatpush1.msra.mxu0 0.0
    %181 = vmatprep.subr.mxu0 0.0
    %182 = vmatpush1.msra.mxu0 0.0
    %183 = vmatprep.subr.mxu0 0.0
    %184 = vmatpush1.msra.mxu0 0.0
    %185 = vmatprep.subr.mxu0 0.0
    %186 = vmatpush1.msra.mxu0 0.0
    %187 = vmatprep.subr.mxu0 0.0
    %188 = vmatpush1.msra.mxu0 0.0
    %189 = vmatprep.subr.mxu0 0.0
    %190 = vmatpush1.msra.mxu0 0.0
    %191 = vmatprep.subr.mxu0 0.0
    %192 = vmatpush1.msra.mxu0 0.0
    %193 = vmatprep.subr.mxu0 0.0
    %194 = vmatpush1.msra.mxu0 0.0
    %195 = vmatprep.subr.mxu0 0.0
    %196 = vmatpush1.msra.mxu0 0.0
    %197 = vmatprep.subr.mxu0 0.0
    %198 = vmatpush1.msra.mxu0 0.0
    %199 = vmatprep.subr.mxu0 0.0
    %200 = vmatpush1.msra.mxu0 0.0
    %201 = vmatprep.subr.mxu0 0.0
    %202 = vmatpush1.msra.mxu0 0.0
    %203 = vmatprep.subr.mxu0 0.0
    %204 = vmatpush1.msra.mxu0 0.0
    %205 = vmatprep.subr.mxu0 0.0
    %206 = vmatpush1.msra.mxu0 0.0
    %207 = vmatprep.subr.mxu0 0.0
    %208 = vmatpush1.msra.mxu0 0.0
    %209 = vmatprep.subr.mxu0 0.0
    %210 = vmatpush1.msra.mxu0 0.0
    %211 = vmatprep.subr.mxu0 0.0
    %212 = vmatpush1.msra.mxu0 0.0
    %213 = vmatprep.subr.mxu0 0.0
    %214 = vmatpush1.msra.mxu0 0.0
    %215 = vmatprep.subr.mxu0 0.0
    %216 = vmatpush1.msra.mxu0 0.0
    %217 = vmatprep.mubr.f32.mxu0 0.0
    %218 = vmatmul.mubr.f32.gmra.mrb[0].mxu0 %v151
    %v219 = vpop.f32.mrb[0].mxu0
    %v220 = vadd.f32 %v147, %v219
    %v221 = vpop.f32.mrb[0].mxu0
    %222 = vdwg.mxu0
    %v223 = vmul.f32 %v220, 0.5
    %v224 = vtanh.pop %v223
    %v225 = vadd.f32 %v224, 1.0
    %v226 = vmul.f32 %v225, 0.5
    %v228 = vlaneseq
    %v229 = vshrl.u32 %v228, 7
    %v230 = vsub.s32 0, %v229
    %v231 = vrot.slane %v53, %v230
    %v234 = vsel %vm149, %v226, 0
    %236 = vmatprep.subr.mxu0 0.0
    %237 = vmatpush1.msra.mxu0 %v49
    %238 = vmatprep.subr.mxu0 0.0
    %239 = vmatpush1.msra.mxu0 %v50
    %240 = vmatprep.subr.mxu0 0.0
    %241 = vmatpush1.msra.mxu0 %v51
    %242 = vmatprep.subr.mxu0 0.0
    %243 = vmatpush1.msra.mxu0 %v52
    %244 = vmatprep.subr.mxu0 0.0
    %245 = vmatpush1.msra.mxu0 0.0
    %246 = vmatprep.subr.mxu0 0.0
    %247 = vmatpush1.msra.mxu0 0.0
    %248 = vmatprep.subr.mxu0 0.0
    %249 = vmatpush1.msra.mxu0 0.0
    %250 = vmatprep.subr.mxu0 0.0
    %251 = vmatpush1.msra.mxu0 0.0
    %252 = vmatprep.subr.mxu0 0.0
    %253 = vmatpush1.msra.mxu0 0.0
    %254 = vmatprep.subr.mxu0 0.0
    %255 = vmatpush1.msra.mxu0 0.0
    %256 = vmatprep.subr.mxu0 0.0
    %257 = vmatpush1.msra.mxu0 0.0
    %258 = vmatprep.subr.mxu0 0.0
    %259 = vmatpush1.msra.mxu0 0.0
    %260 = vmatprep.subr.mxu0 0.0
    %261 = vmatpush1.msra.mxu0 0.0
    %262 = vmatprep.subr.mxu0 0.0
    %263 = vmatpush1.msra.mxu0 0.0
    %264 = vmatprep.subr.mxu0 0.0
    %265 = vmatpush1.msra.mxu0 0.0
    %266 = vmatprep.subr.mxu0 0.0
    %267 = vmatpush1.msra.mxu0 0.0
    %268 = vmatprep.subr.mxu0 0.0
    %269 = vmatpush1.msra.mxu0 0.0
    %270 = vmatprep.subr.mxu0 0.0
    %271 = vmatpush1.msra.mxu0 0.0
    %272 = vmatprep.subr.mxu0 0.0
    %273 = vmatpush1.msra.mxu0 0.0
    %274 = vmatprep.subr.mxu0 0.0
    %275 = vmatpush1.msra.mxu0 0.0
    %276 = vmatprep.subr.mxu0 0.0
    %277 = vmatpush1.msra.mxu0 0.0
    %278 = vmatprep.subr.mxu0 0.0
    %279 = vmatpush1.msra.mxu0 0.0
    %280 = vmatprep.subr.mxu0 0.0
    %281 = vmatpush1.msra.mxu0 0.0
    %282 = vmatprep.subr.mxu0 0.0
    %283 = vmatpush1.msra.mxu0 0.0
    %284 = vmatprep.subr.mxu0 0.0
    %285 = vmatpush1.msra.mxu0 0.0
    %286 = vmatprep.subr.mxu0 0.0
    %287 = vmatpush1.msra.mxu0 0.0
    %288 = vmatprep.subr.mxu0 0.0
    %289 = vmatpush1.msra.mxu0 0.0
    %290 = vmatprep.subr.mxu0 0.0
    %291 = vmatpush1.msra.mxu0 0.0
    %292 = vmatprep.subr.mxu0 0.0
    %293 = vmatpush1.msra.mxu0 0.0
    %294 = vmatprep.subr.mxu0 0.0
    %295 = vmatpush1.msra.mxu0 0.0
    %296 = vmatprep.subr.mxu0 0.0
    %297 = vmatpush1.msra.mxu0 0.0
    %298 = vmatprep.subr.mxu0 0.0
    %299 = vmatpush1.msra.mxu0 0.0
    %300 = vmatprep.mubr.f32.mxu0 0.0
    %301 = vmatmul.mubr.f32.gmra.mrb[0].mxu0 %v234
    %v302 = vpop.f32.mrb[0].mxu0
    %v303 = vadd.f32 %v231, %v302
    %v304 = vpop.f32.mrb[0].mxu0
    %305 = vdwg.mxu0
    %vm306 = vcmask 23552
    %307 = vst.msk [vmem:[%s7] sm:$0xff] %vm306, %v303
    // Predicated region
    $region34: #{tpu_custom_call.1} parent=1 // pred_check
      _
    $region35: #{tpu_custom_call.1} parent=1 // pred_check_branch
      %309 = sbr.rel (0) target = $region37
    $region36: #{tpu_custom_call.1} parent=1 // pred_region
      _
    $region37: #{tpu_custom_call.1} parent=1 // pred_fallthru
      _
    // Predicated region
    $region38: #{tpu_custom_call.1} parent=1 // pred_check
      _
    $region39: #{tpu_custom_call.1} parent=1 // pred_check_branch
      %311 = sbr.rel (0) target = $region41
    $region40: #{tpu_custom_call.1} parent=1 // pred_region
      _
    $region41: #{tpu_custom_call.1} parent=1 // pred_fallthru
      _
    %312 = vsyncpa [#allocation3], 1

</llo_original>
